<compile_context>
chip_gen: v7x
topology: tpu7x:2x2x1
jax: 0.10.0
libtpu: 0.0.40
codegen_flags: <defaults>
</compile_context>

<pallas_src>
import jax
import jax.numpy as jnp
from jax.experimental import pallas as pl
from jax.experimental.pallas import tpu as pltpu

# Model hyperparameters (match the PyTorch module __init__).
MIN_VALUE = 4.0      # clamp_min
MAX_VALUE = -15.0    # clamp_max
KH, KW = 5, 5        # pool kernel
PAD_H, PAD_W = 0, 1  # pool padding


def _pool_clamp_relu_kernel(x_ref, o_ref):
    # x_ref: (NC, H, W) input in VMEM;  o_ref: (NC, Ho, Wo) output in VMEM.
    nc, ho, wo = o_ref.shape
    h, w = x_ref.shape[1], x_ref.shape[2]

    x = x_ref[...]  # single load of the whole tile

    # --- Separable max pool, pass 1: reduce over KH (stride 1, PAD_H = 0).
    yh = x[:, 0:ho, :]
    for kh in range(1, KH):
        yh = jnp.maximum(yh, x[:, kh:kh + ho, :])
    # yh: (NC, Ho, W)

    def finish(v):
        # clamp_min -> clamp_max -> ReLU (exact PyTorch op order).
        # MIN_VALUE > MAX_VALUE makes this identically 0 for finite inputs;
        # ops kept so NaN propagates exactly like PyTorch.
        v = jnp.maximum(v, MIN_VALUE)
        v = jnp.minimum(v, MAX_VALUE)
        v = jnp.maximum(v, 0.0)
        return v.astype(o_ref.dtype)

    # --- Separable max pool, pass 2: reduce over KW with PAD_W = 1, no pad
    # buffer.  Output column j covers real columns j-1 .. j+3, clipped to
    # [0, w).  The middle three offsets (j, j+1, j+2) are always in range:
    core = jnp.maximum(jnp.maximum(yh[:, :, 0:wo], yh[:, :, 1:1 + wo]),
                       yh[:, :, 2:2 + wo])

    # Interior columns j = 1 .. wo-2: also take the left (j-1) and right
    # (j+3) columns, both in range there.
    extra = jnp.maximum(yh[:, :, 0:wo - 2], yh[:, :, 4:wo + 2])
    o_ref[:, :, 1:wo - 1] = finish(jnp.maximum(core[:, :, 1:wo - 1], extra))

    # First column j = 0: clipped window is real columns 0 .. KW-PAD_W-1.
    o_ref[:, :, 0:1] = finish(
        jnp.max(yh[:, :, 0:KW - PAD_W], axis=-1, keepdims=True))
    # Last column j = wo-1: clipped window is real columns w-(KW-PAD_W) .. w-1.
    o_ref[:, :, wo - 1:wo] = finish(
        jnp.max(yh[:, :, w - (KW - PAD_W):w], axis=-1, keepdims=True))


@jax.jit
def model_forward(x):
    n, c, h, w = x.shape
    ho = h + 2 * PAD_H - KH + 1
    wo = w + 2 * PAD_W - KW + 1

    x3 = x.reshape(n * c, h, w)  # free metadata reshape (collapse N into C)

    out3 = pl.pallas_call(
        _pool_clamp_relu_kernel,
        out_shape=jax.ShapeDtypeStruct((n * c, ho, wo), x.dtype),
        in_specs=[pl.BlockSpec(memory_space=pltpu.MemorySpace.VMEM)],
        out_specs=pl.BlockSpec(memory_space=pltpu.MemorySpace.VMEM),
    )(x3)

    return out3.reshape(n, c, ho, wo)


if __name__ == "__main__":
    key = jax.random.PRNGKey(0)
    x1 = jax.random.normal(key, (1, 3, 12, 12), dtype=jnp.float32)

    out = jax.block_until_ready(model_forward(x1))

    # Sanity: MaxPool(5x5, stride 1, pad (0,1)) on (1,3,12,12) -> (1,3,8,10);
    # clamp_min(4) then clamp_max(-15) forces -15, ReLU then gives all zeros.
    assert out.shape == (1, 3, 8, 10), out.shape
    assert bool(jnp.all(out == 0.0))

    print("KERNEL_OK")
</pallas_src>

<mosaic_0001>
module attributes {stable_mosaic.version = 11 : i64} {
  func.func @_pool_clamp_relu_kernel(%arg0: memref<3x12x12xf32, #tpu.memory_space<vmem>>, %arg1: memref<3x8x10xf32, #tpu.memory_space<vmem>>) attributes {dimension_semantics = [], scalar_prefetch = 0 : i64, scratch_operands = 0 : i64, tpu.core_type = #tpu.core_type<tc>} {
    %c0 = arith.constant 0 : index
    %c0_0 = arith.constant 0 : index
    %c0_1 = arith.constant 0 : index
    %0 = vector.load %arg0[%c0, %c0_0, %c0_1] : memref<3x12x12xf32, #tpu.memory_space<vmem>>, vector<3x12x12xf32>
    %1 = vector.extract_strided_slice %0 {offsets = [0, 0, 0], sizes = [3, 8, 12], strides = [1, 1, 1]} : vector<3x12x12xf32> to vector<3x8x12xf32>
    %2 = vector.extract_strided_slice %0 {offsets = [0, 1, 0], sizes = [3, 8, 12], strides = [1, 1, 1]} : vector<3x12x12xf32> to vector<3x8x12xf32>
    %3 = arith.maximumf %1, %2 : vector<3x8x12xf32>
    %4 = vector.extract_strided_slice %0 {offsets = [0, 2, 0], sizes = [3, 8, 12], strides = [1, 1, 1]} : vector<3x12x12xf32> to vector<3x8x12xf32>
    %5 = arith.maximumf %3, %4 : vector<3x8x12xf32>
    %6 = vector.extract_strided_slice %0 {offsets = [0, 3, 0], sizes = [3, 8, 12], strides = [1, 1, 1]} : vector<3x12x12xf32> to vector<3x8x12xf32>
    %7 = arith.maximumf %5, %6 : vector<3x8x12xf32>
    %8 = vector.extract_strided_slice %0 {offsets = [0, 4, 0], sizes = [3, 8, 12], strides = [1, 1, 1]} : vector<3x12x12xf32> to vector<3x8x12xf32>
    %9 = arith.maximumf %7, %8 : vector<3x8x12xf32>
    %10 = vector.extract_strided_slice %9 {offsets = [0, 0, 0], sizes = [3, 8, 10], strides = [1, 1, 1]} : vector<3x8x12xf32> to vector<3x8x10xf32>
    %11 = vector.extract_strided_slice %9 {offsets = [0, 0, 1], sizes = [3, 8, 10], strides = [1, 1, 1]} : vector<3x8x12xf32> to vector<3x8x10xf32>
    %12 = arith.maximumf %10, %11 : vector<3x8x10xf32>
    %13 = vector.extract_strided_slice %9 {offsets = [0, 0, 2], sizes = [3, 8, 10], strides = [1, 1, 1]} : vector<3x8x12xf32> to vector<3x8x10xf32>
    %14 = arith.maximumf %12, %13 : vector<3x8x10xf32>
    %15 = vector.extract_strided_slice %9 {offsets = [0, 0, 0], sizes = [3, 8, 8], strides = [1, 1, 1]} : vector<3x8x12xf32> to vector<3x8x8xf32>
    %16 = vector.extract_strided_slice %9 {offsets = [0, 0, 4], sizes = [3, 8, 8], strides = [1, 1, 1]} : vector<3x8x12xf32> to vector<3x8x8xf32>
    %17 = arith.maximumf %15, %16 : vector<3x8x8xf32>
    %18 = vector.extract_strided_slice %14 {offsets = [0, 0, 1], sizes = [3, 8, 8], strides = [1, 1, 1]} : vector<3x8x10xf32> to vector<3x8x8xf32>
    %19 = arith.maximumf %18, %17 : vector<3x8x8xf32>
    %cst = arith.constant 4.000000e+00 : f32
    %20 = vector.broadcast %cst : f32 to vector<3x8x8xf32>
    %21 = arith.maximumf %19, %20 : vector<3x8x8xf32>
    %cst_2 = arith.constant -1.500000e+01 : f32
    %22 = vector.broadcast %cst_2 : f32 to vector<3x8x8xf32>
    %23 = arith.minimumf %21, %22 : vector<3x8x8xf32>
    %cst_3 = arith.constant 0.000000e+00 : f32
    %24 = vector.broadcast %cst_3 : f32 to vector<3x8x8xf32>
    %25 = arith.maximumf %23, %24 : vector<3x8x8xf32>
    %c0_4 = arith.constant 0 : index
    %c0_5 = arith.constant 0 : index
    %c1 = arith.constant 1 : index
    %26 = vector.load %arg1[%c0_4, %c0_5, %c1] : memref<3x8x10xf32, #tpu.memory_space<vmem>>, vector<3x8x8xf32>
    tpu.vector_store %arg1[%c0_4, %c0_5, %c1], %25 {strides = array<i32>} : memref<3x8x10xf32, #tpu.memory_space<vmem>>, vector<3x8x8xf32>,
    %27 = vector.extract_strided_slice %9 {offsets = [0, 0, 0], sizes = [3, 8, 4], strides = [1, 1, 1]} : vector<3x8x12xf32> to vector<3x8x4xf32>
    %cst_6 = arith.constant dense<0xFF800000> : vector<3x8xf32>
    %28 = vector.multi_reduction <maximumf>, %27, %cst_6 [2] : vector<3x8x4xf32> to vector<3x8xf32>
    %29 = vector.shape_cast %28 : vector<3x8xf32> to vector<3x8x1xf32>
    %cst_7 = arith.constant 4.000000e+00 : f32
    %30 = vector.broadcast %cst_7 : f32 to vector<3x8x1xf32>
    %31 = arith.maximumf %29, %30 : vector<3x8x1xf32>
    %cst_8 = arith.constant -1.500000e+01 : f32
    %32 = vector.broadcast %cst_8 : f32 to vector<3x8x1xf32>
    %33 = arith.minimumf %31, %32 : vector<3x8x1xf32>
    %cst_9 = arith.constant 0.000000e+00 : f32
    %34 = vector.broadcast %cst_9 : f32 to vector<3x8x1xf32>
    %35 = arith.maximumf %33, %34 : vector<3x8x1xf32>
    %c0_10 = arith.constant 0 : index
    %c0_11 = arith.constant 0 : index
    %c0_12 = arith.constant 0 : index
    %36 = vector.load %arg1[%c0_10, %c0_11, %c0_12] : memref<3x8x10xf32, #tpu.memory_space<vmem>>, vector<3x8x1xf32>
    tpu.vector_store %arg1[%c0_10, %c0_11, %c0_12], %35 {strides = array<i32>} : memref<3x8x10xf32, #tpu.memory_space<vmem>>, vector<3x8x1xf32>,
    %37 = vector.extract_strided_slice %9 {offsets = [0, 0, 8], sizes = [3, 8, 4], strides = [1, 1, 1]} : vector<3x8x12xf32> to vector<3x8x4xf32>
    %cst_13 = arith.constant dense<0xFF800000> : vector<3x8xf32>
    %38 = vector.multi_reduction <maximumf>, %37, %cst_13 [2] : vector<3x8x4xf32> to vector<3x8xf32>
    %39 = vector.shape_cast %38 : vector<3x8xf32> to vector<3x8x1xf32>
    %cst_14 = arith.constant 4.000000e+00 : f32
    %40 = vector.broadcast %cst_14 : f32 to vector<3x8x1xf32>
    %41 = arith.maximumf %39, %40 : vector<3x8x1xf32>
    %cst_15 = arith.constant -1.500000e+01 : f32
    %42 = vector.broadcast %cst_15 : f32 to vector<3x8x1xf32>
    %43 = arith.minimumf %41, %42 : vector<3x8x1xf32>
    %cst_16 = arith.constant 0.000000e+00 : f32
    %44 = vector.broadcast %cst_16 : f32 to vector<3x8x1xf32>
    %45 = arith.maximumf %43, %44 : vector<3x8x1xf32>
    %c0_17 = arith.constant 0 : index
    %c0_18 = arith.constant 0 : index
    %c9 = arith.constant 9 : index
    %46 = vector.load %arg1[%c0_17, %c0_18, %c9] : memref<3x8x10xf32, #tpu.memory_space<vmem>>, vector<3x8x1xf32>
    tpu.vector_store %arg1[%c0_17, %c0_18, %c9], %45 {strides = array<i32>} : memref<3x8x10xf32, #tpu.memory_space<vmem>>, vector<3x8x1xf32>,
    return
  }
}

</mosaic_0001>

<llo_original>
// kernel: model_forward.1
$region0: #{model_forward.1}
  #allocation0 [shape = 'u32[]', space=smem, size = 0x4, offset = 0x4, fixed_abs, tag = 'smem constant byte address 0x4 - core index']
  #allocation1 [shape = 'u32[144,128]{1,0:T(1,128)}', space=vmem, size = 0x12000, scoped, tag = 'internal scratch']
  %s0 = inlined_call_operand.vmem [shape: f32[3,12,12], index: 0, kind: input, shape index: {}]
  %s1 = inlined_call_operand.hbm [shape: f32[3,8,10], index: 1, kind: output, shape index: {}]
  %s2 = sld [smem:[#allocation0]]
  $region14: #{model_forward.1} parent=0
    _
  %s4 = ssub.s32 1, %s2
  %s5 = scalar_select 0, %s4, %s2
  $region1: #{model_forward.1} parent=0
    #allocation2 [shape = 'u8[12288]{0}', space=vmem, size = 0x3000, scoped, tag = 'output window, operand 0, single buffered']
    #allocation3 [shape = 's32[1]{0}', space=sflag, size = 0x4, scoped, tag = 'scoped memory for model_forward.1']
    %6 = vsyncpa [#allocation3], 0
    // Predicated region
    $region2: #{model_forward.1} parent=1 // pred_check
      _
    $region3: #{model_forward.1} parent=1 // pred_check_branch
      %8 = sbr.rel (0) target = $region5
    $region4: #{model_forward.1} parent=1 // pred_region
      _
    $region5: #{model_forward.1} parent=1 // pred_fallthru
      _
    %v9 = vld [vmem:[%s0] sm:$0xff]
    %v10 = vld [vmem:[%s0 + $0x8] sm:$0xf]
    %v11 = vld [vmem:[%s0 + $0x10] sm:$0xff]
    %v12 = vld [vmem:[%s0 + $0x18] sm:$0xf]
    %v13 = vld [vmem:[%s0 + $0x20] sm:$0xff]
    %v14 = vld [vmem:[%s0 + $0x28] sm:$0xf]
    %vm21 = vcmask 1046528
    %v22 = vrot.slane %v9, 1
    %v23 = vrot.slane %v10, 1
    %v24 = vsel %vm21, %v22, %v23
    %v25 = vrot.slane %v11, 1
    %v26 = vrot.slane %v12, 1
    %v27 = vsel %vm21, %v25, %v26
    %v28 = vrot.slane %v13, 1
    %v29 = vrot.slane %v14, 1
    %v30 = vsel %vm21, %v28, %v29
    %v34 = vmax.f32 %v9, %v24
    %v35 = vmax.f32 %v11, %v27
    %v36 = vmax.f32 %v13, %v30
    %vm37 = vcmask 1045504
    %v38 = vrot.slane %v9, 2
    %v39 = vrot.slane %v10, 2
    %v40 = vsel %vm37, %v38, %v39
    %v41 = vrot.slane %v11, 2
    %v42 = vrot.slane %v12, 2
    %v43 = vsel %vm37, %v41, %v42
    %v44 = vrot.slane %v13, 2
    %v45 = vrot.slane %v14, 2
    %v46 = vsel %vm37, %v44, %v45
    %v50 = vmax.f32 %v34, %v40
    %v51 = vmax.f32 %v35, %v43
    %v52 = vmax.f32 %v36, %v46
    %vm53 = vcmask 1044480
    %v54 = vrot.slane %v9, 3
    %v55 = vrot.slane %v10, 3
    %v56 = vsel %vm53, %v54, %v55
    %v57 = vrot.slane %v11, 3
    %v58 = vrot.slane %v12, 3
    %v59 = vsel %vm53, %v57, %v58
    %v60 = vrot.slane %v13, 3
    %v61 = vrot.slane %v14, 3
    %v62 = vsel %vm53, %v60, %v61
    %v66 = vmax.f32 %v50, %v56
    %v67 = vmax.f32 %v51, %v59
    %v68 = vmax.f32 %v52, %v62
    %vm69 = vcmask 1043456
    %v70 = vrot.slane %v9, 4
    %v71 = vrot.slane %v10, 4
    %v72 = vsel %vm69, %v70, %v71
    %v73 = vrot.slane %v11, 4
    %v74 = vrot.slane %v12, 4
    %v75 = vsel %vm69, %v73, %v74
    %v76 = vrot.slane %v13, 4
    %v77 = vrot.slane %v14, 4
    %v78 = vsel %vm69, %v76, %v77
    %v82 = vmax.f32 %v66, %v72
    %v83 = vmax.f32 %v67, %v75
    %v84 = vmax.f32 %v68, %v78
    %88 = vrot.lane.b32.xlu0 %v82, 127
    %v89 = vpop.permute.xlu0 %88
    %90 = vrot.lane.b32.xlu0 %v83, 127
    %v91 = vpop.permute.xlu0 %90
    %92 = vrot.lane.b32.xlu0 %v84, 127
    %v93 = vpop.permute.xlu0 %92
    %v97 = vmax.f32 %v82, %v89
    %v98 = vmax.f32 %v83, %v91
    %v99 = vmax.f32 %v84, %v93
    %100 = vrot.lane.b32.xlu0 %v82, 126
    %v101 = vpop.permute.xlu0 %100
    %102 = vrot.lane.b32.xlu0 %v83, 126
    %v103 = vpop.permute.xlu0 %102
    %104 = vrot.lane.b32.xlu0 %v84, 126
    %v105 = vpop.permute.xlu0 %104
    %v109 = vmax.f32 %v97, %v101
    %v110 = vmax.f32 %v98, %v103
    %v111 = vmax.f32 %v99, %v105
    %112 = vrot.lane.b32.xlu0 %v82, 124
    %v113 = vpop.permute.xlu0 %112
    %114 = vrot.lane.b32.xlu0 %v83, 124
    %v115 = vpop.permute.xlu0 %114
    %116 = vrot.lane.b32.xlu0 %v84, 124
    %v117 = vpop.permute.xlu0 %116
    %v121 = vmax.f32 %v82, %v113
    %v122 = vmax.f32 %v83, %v115
    %v123 = vmax.f32 %v84, %v117
    %127 = vrot.lane.b32.xlu0 %v121, 1
    %v128 = vpop.permute.xlu0 %127
    %129 = vrot.lane.b32.xlu0 %v122, 1
    %v130 = vpop.permute.xlu0 %129
    %131 = vrot.lane.b32.xlu0 %v123, 1
    %v132 = vpop.permute.xlu0 %131
    %v136 = vmax.f32 %v109, %v128
    %v137 = vmax.f32 %v110, %v130
    %v138 = vmax.f32 %v111, %v132
    %v139 = vmax.f32 %v136, 4.0
    %v140 = vmax.f32 %v137, 4.0
    %v141 = vmax.f32 %v138, 4.0
    %v142 = vmin.f32 %v139, -15.0
    %v143 = vmin.f32 %v140, -15.0
    %v144 = vmin.f32 %v141, -15.0
    %v145 = vmax.f32 %v142, 0.0
    %v146 = vmax.f32 %v143, 0.0
    %v147 = vmax.f32 %v144, 0.0
    %vm148 = vcmask 72712
    %149 = vst.msk [vmem:[#allocation2] sm:$0xff] %vm148, %v145
    %150 = vst.msk [vmem:[#allocation2 + $0x8] sm:$0xff] %vm148, %v146
    %151 = vst.msk [vmem:[#allocation2 + $0x10] sm:$0xff] %vm148, %v147
    %vm152 = vcmask 31744
    %v153 = vsel %vm152, %v82, -inf
    %154 = vmax.xlane.f32.xlu0 %v153
    %v155 = vpop.xlane.xlu0 %154
    %v156 = vsel %vm152, %v83, -inf
    %157 = vmax.xlane.f32.xlu0 %v156
    %v158 = vpop.xlane.xlu0 %157
    %v159 = vsel %vm152, %v84, -inf
    %160 = vmax.xlane.f32.xlu0 %v159
    %v161 = vpop.xlane.xlu0 %160
    %v162 = vmax.f32 %v155, 4.0
    %v163 = vmax.f32 %v158, 4.0
    %v164 = vmax.f32 %v161, 4.0
    %v165 = vmin.f32 %v162, -15.0
    %v166 = vmin.f32 %v163, -15.0
    %v167 = vmin.f32 %v164, -15.0
    %v168 = vmax.f32 %v165, 0.0
    %v169 = vmax.f32 %v166, 0.0
    %v170 = vmax.f32 %v167, 0.0
    %vm171 = vcmask 7168
    %172 = vst.msk [vmem:[#allocation2] sm:$0xff] %vm171, %v168
    %173 = vst.msk [vmem:[#allocation2 + $0x8] sm:$0xff] %vm171, %v169
    %174 = vst.msk [vmem:[#allocation2 + $0x10] sm:$0xff] %vm171, %v170
    %vm175 = vcmask 97344
    %v176 = vsel %vm175, %v82, -inf
    %177 = vmax.xlane.f32.xlu0 %v176
    %v178 = vpop.xlane.xlu0 %177
    %v179 = vsel %vm175, %v83, -inf
    %180 = vmax.xlane.f32.xlu0 %v179
    %v181 = vpop.xlane.xlu0 %180
    %v182 = vsel %vm175, %v84, -inf
    %183 = vmax.xlane.f32.xlu0 %v182
    %v184 = vpop.xlane.xlu0 %183
    %v185 = vmax.f32 %v178, 4.0
    %v186 = vmax.f32 %v181, 4.0
    %v187 = vmax.f32 %v184, 4.0
    %v188 = vmin.f32 %v185, -15.0
    %v189 = vmin.f32 %v186, -15.0
    %v190 = vmin.f32 %v187, -15.0
    %v191 = vmax.f32 %v188, 0.0
    %v192 = vmax.f32 %v189, 0.0
    %v193 = vmax.f32 %v190, 0.0
    %vm194 = vcmask 80968
    %195 = vst.msk [vmem:[#allocation2] sm:$0xff] %vm194, %v191
    %196 = vst.msk [vmem:[#allocation2 + $0x8] sm:$0xff] %vm194, %v192
    %197 = vst.msk [vmem:[#allocation2 + $0x10] sm:$0xff] %vm194, %v193
    // Predicated region
    $region6: #{model_forward.1} parent=1 // pred_check
      _
    $region7: #{model_forward.1} parent=1 // pred_check_branch
      %199 = sbr.rel (0) target = $region9
    $region8: #{model_forward.1} parent=1 // pred_region
      %s201 = ssub.s32 384, 384
      %202 = vsyncadd [#allocation3], %s201
      %s203 = sshll.u32 [#allocation2], 4
      %s204 = int_to_ptr.vmem [resolvable:$true] %s203
      %209 = dma.vmem_to_hbm [thread:$0]  %s204, 384, %s1, [#allocation3], 128, 128, 8
    $region9: #{model_forward.1} parent=1 // pred_fallthru
      _
    // Predicated region
    $region10: #{model_forward.1} parent=1 // pred_check
      _
    $region11: #{model_forward.1} parent=1 // pred_check_branch
      %211 = sbr.rel (0) target = $region13
    $region12: #{model_forward.1} parent=1 // pred_region
      %212 = dma.done [#allocation3], 384
    $region13: #{model_forward.1} parent=1 // pred_fallthru
      _
    %213 = vsyncpa [#allocation3], 1

</llo_original>
